<compile_context>
chip_gen: v5e
topology: v5e:2x2
jax: 0.10.0
libtpu: 0.0.40
codegen_flags: <defaults>
</compile_context>

<pallas_src>
import functools

import jax
import jax.numpy as jnp
from jax import lax
from jax.experimental import pallas as pl
from jax.experimental.pallas import tpu as pltpu


def _darts_kernel(id_ref, w_ref, x_ref, o_ref, *, H, W):
    """Fused DARTS op mixture for one batch-block.

    id_ref : SMEM f32[1]        identity/skip scale (softmax[2] + skip_w)
    w_ref  : VMEM [9, BC, BC]   per-tap block-diagonal folded conv weights
    x_ref  : VMEM [BC, L]       B_TILE images stacked on sublanes, L = H*W
    o_ref  : VMEM [BC, L]
    """
    L = H * W
    x = x_ref[...]

    # Tap-validity masks, hoisted once.  For tap (dh, dw) the lane-rolled read
    # x[(p + dh*W + dw) mod L] is correct exactly where (row+dh, col+dw) stays
    # inside the image; everywhere else the contribution is zeroed.
    pos = lax.broadcasted_iota(jnp.int32, (1, L), 1)
    col = pos % W
    row_ok = {-1: pos >= W, 0: None, 1: pos < L - W}
    col_ok = {-1: col >= 1, 0: None, 1: col <= W - 2}

    # Identity op + auxiliary skip: one exact f32 scalar*tile VPU FMA.
    acc = id_ref[0] * x.astype(jnp.float32)

    for kh in range(3):
        for kw in range(3):
            dh, dw = kh - 1, kw - 1
            d = dh * W + dw                     # flat lane shift of this tap
            # XLU lane roll — no halo scratch, no unaligned window slices.
            xs = x if d == 0 else pltpu.roll(x, (-d) % L, 1)
            mask = None
            for m in (row_ok[dh], col_ok[dw]):
                if m is not None:
                    mask = m if mask is None else (mask & m)
            if mask is not None:
                xs = jnp.where(mask, xs, 0)
            # One accumulating MXU dot per tap — no im2col concat slab.
            acc = acc + jnp.dot(w_ref[kh * 3 + kw], xs,
                                preferred_element_type=jnp.float32)

    o_ref[...] = acc.astype(o_ref.dtype)


def _pick_batch_tile(N, C, L, itemsize, *, max_bc=256, max_block_bytes=4 << 20):
    """Largest batch tile that divides N, keeps (B*C, L) blocks sublane-legal
    ((B*C) % 8 == 0 or full batch) and within a few MiB per buffer."""
    divisors = [b for b in range(1, N + 1) if N % b == 0]
    fitting = [b for b in divisors
               if b * C <= max_bc and b * C * L * itemsize <= max_block_bytes]
    legal = [b for b in fitting if (b * C) % 8 == 0 or b == N]
    if not legal:
        # Full-batch block is always layout-legal (block dim == array dim).
        # TODO(synk): H-tiling with a 1-row halo for blocks too big for VMEM.
        legal = [N]
    return max(legal)


@jax.jit
def darts_layer_choice(x_nchw, alpha, w3_hwio, w1_io, skip_w):
    """Forward pass of DartsLayerChoice (3x3 conv / 1x1 conv / identity mix).

    x_nchw : [N, C, H, W]      input (f32 or bf16)
    alpha  : f32[3]            architecture logits
    w3_hwio: f32[3, 3, C, C]   3x3 conv weight, HWIO
    w1_io  : f32[C, C]         1x1 conv weight, (in, out)
    skip_w : scalar            auxiliary_skip_weight.weight (fixed constant)
    Returns [N, C, H, W] in x's dtype.
    """
    N, C, H, W = x_nchw.shape
    L = H * W
    out_dtype = x_nchw.dtype
    itemsize = jnp.dtype(x_nchw.dtype).itemsize

    # ---- fold softmax(alpha) and the 1x1 conv into ONE effective 3x3 --------
    sm = jax.nn.softmax(alpha.astype(jnp.float32), axis=-1)
    w_eff = sm[0] * w3_hwio.astype(jnp.float32)               # [3,3,Cin,Cout]
    w_eff = w_eff.at[1, 1].add(sm[1] * w1_io.astype(jnp.float32))
    # identity op + auxiliary skip stay out of the matmul (exact f32 in-kernel)
    id_scale = (sm[2] + jnp.asarray(skip_w, jnp.float32)).reshape(1)

    # ---- batch blocking: B_TILE images per grid step, stacked on sublanes ---
    b_tile = _pick_batch_tile(N, C, L, itemsize)
    bc = b_tile * C

    # Per-tap block-diagonal weights [9, BC, BC]:
    #   Wblk[k, b*C+co, b*C+ci] = w_eff[k, ci, co]
    # so the kernel computes out = sum_k Wblk_k @ xs_k as one batched MXU dot
    # per tap, keeping the weights stationary across the whole block.
    compute_dtype = jnp.bfloat16 if x_nchw.dtype == jnp.bfloat16 else jnp.float32
    w_t = jnp.transpose(w_eff.reshape(9, C, C), (0, 2, 1))    # [9, Cout, Cin]
    eye_b = jnp.eye(b_tile, dtype=jnp.float32)
    w_blk = jnp.einsum('pq,koc->kpoqc', eye_b, w_t).reshape(9, bc, bc)
    w_blk = w_blk.astype(compute_dtype)

    # NCHW -> [N*C, H*W] is a free reshape: batch*channel on sublanes, spatial
    # on lanes.  L (=256 here) is a multiple of 128, so output stores remain
    # unmasked full-lane vst's.
    x2d = x_nchw.reshape(N * C, L)

    # ---- VMEM budget derived from the running chip generation ---------------
    in_bytes = bc * L * itemsize
    out_bytes = bc * L * jnp.dtype(out_dtype).itemsize
    w_bytes = 9 * bc * bc * jnp.dtype(compute_dtype).itemsize
    vmem_need = 2 * (in_bytes + out_bytes + w_bytes) + (2 << 20)
    try:
        vmem_cap = int(pltpu.get_tpu_info().vmem_capacity_bytes)
    except Exception:
        vmem_cap = 64 << 20            # conservative: v7x per-core VMEM
    vmem_limit = int(min(max(vmem_need, 16 << 20),
                         max(vmem_cap - (24 << 20), 16 << 20)))

    kernel = functools.partial(_darts_kernel, H=H, W=W)

    out2d = pl.pallas_call(
        kernel,
        out_shape=jax.ShapeDtypeStruct((N * C, L), out_dtype),
        grid=(N // b_tile,),
        in_specs=[
            pl.BlockSpec((1,), lambda n: (0,),
                         memory_space=pltpu.MemorySpace.SMEM),
            pl.BlockSpec((9, bc, bc), lambda n: (0, 0, 0)),
            pl.BlockSpec((bc, L), lambda n: (n, 0)),
        ],
        out_specs=pl.BlockSpec((bc, L), lambda n: (n, 0)),
        compiler_params=pltpu.CompilerParams(
            dimension_semantics=("parallel",),
            vmem_limit_bytes=vmem_limit,
        ),
    )(id_scale, w_blk, x2d)

    return out2d.reshape(N, C, H, W)


def _reference(x_nchw, alpha, w3_hwio, w1_io, skip_w):
    """Pure-JAX reference (lax.conv, HIGHEST precision) for verification."""
    x = jnp.transpose(x_nchw, (0, 2, 3, 1)).astype(jnp.float32)   # NHWC
    dn = lax.conv_dimension_numbers(x.shape, w3_hwio.shape,
                                    ("NHWC", "HWIO", "NHWC"))
    y0 = lax.conv_general_dilated(x, w3_hwio, (1, 1), "SAME",
                                  dimension_numbers=dn,
                                  precision=lax.Precision.HIGHEST)
    y1 = jnp.einsum("nhwc,cd->nhwd", x, w1_io,
                    precision=lax.Precision.HIGHEST)
    y2 = x
    sm = jax.nn.softmax(alpha.astype(jnp.float32), axis=-1)
    out = sm[0] * y0 + sm[1] * y1 + sm[2] * y2 + skip_w * x
    return jnp.transpose(out, (0, 3, 1, 2))


if __name__ == "__main__":
    key = jax.random.PRNGKey(0)
    k_x, k_a, k_w3, k_w1 = jax.random.split(key, 4)

    N, C, H, W = 2, 4, 16, 16
    x = jax.random.normal(k_x, (N, C, H, W), dtype=jnp.float32)

    # alpha = randn(num_ops) * 0.001, as in DartsLayerChoice.__init__
    alpha = jax.random.normal(k_a, (3,), dtype=jnp.float32) * 0.001
    # candidate-op weights (deterministic synthetic init, no bias)
    w3 = jax.random.normal(k_w3, (3, 3, C, C), dtype=jnp.float32) * 0.1  # HWIO
    w1 = jax.random.normal(k_w1, (C, C), dtype=jnp.float32) * 0.1        # (in,out)

    # TODO(synk): DecayScheduler schedule not specified; fixed constant weight.
    skip_w = jnp.float32(0.5)

    out = darts_layer_choice(x, alpha, w3, w1, skip_w)
    jax.block_until_ready(out)

    ref = _reference(x, alpha, w3, w1, skip_w)
    assert out.shape == (N, C, H, W)
    # Conv/1x1 products run on the MXU with f32 accumulation; the identity +
    # skip path is an exact f32 VPU FMA.  2e-3 leaves margin for MXU f32
    # operand handling while still catching any tap/roll indexing error
    # (those show up at ~1e-1).
    assert jnp.allclose(out, ref, atol=2e-3, rtol=2e-3), "mismatch vs reference"

    print("KERNEL_OK")
</pallas_src>

<mosaic_0001>
module attributes {stable_mosaic.version = 11 : i64} {
  func.func @_darts_kernel(%arg0: i32, %arg1: memref<1xf32, #tpu.memory_space<smem>>, %arg2: memref<9x8x8xf32, #tpu.memory_space<vmem>>, %arg3: memref<8x256xf32, #tpu.memory_space<vmem>>, %arg4: memref<8x256xf32, #tpu.memory_space<vmem>>) attributes {dimension_semantics = [#tpu.dimension_semantics<parallel>], iteration_bounds = array<i64: 1>, scalar_prefetch = 0 : i64, scratch_operands = 0 : i64, tpu.core_type = #tpu.core_type<tc>, window_params = [{transform_indices = @transform_0, window_bounds = array<i64: 1>}, {pipeline_mode = #tpu.pipeline_mode<synchronous>, transform_indices = @transform_1, window_bounds = array<i64: 9, 8, 8>}, {transform_indices = @transform_2, window_bounds = array<i64: 8, 256>}, {transform_indices = @transform_3, window_bounds = array<i64: 8, 256>}]} {
    %c0 = arith.constant 0 : index
    %c0_0 = arith.constant 0 : index
    %0 = vector.load %arg3[%c0, %c0_0] : memref<8x256xf32, #tpu.memory_space<vmem>>, vector<8x256xf32>
    %1 = tpu.iota {dimensions = array<i32: 1>} : vector<1x256xi32>
    %c16_i32 = arith.constant 16 : i32
    %c0_i32 = arith.constant 0 : i32
    %2 = arith.cmpi eq, %c16_i32, %c0_i32 : i32
    %c1_i32 = arith.constant 1 : i32
    %3 = arith.select %2, %c1_i32, %c16_i32 : i32
    %4 = vector.broadcast %3 : i32 to vector<1x256xi32>
    %5 = arith.remsi %1, %4 : vector<1x256xi32>
    %c0_i32_1 = arith.constant 0 : i32
    %6 = vector.broadcast %c0_i32_1 : i32 to vector<1x256xi32>
    %7 = arith.cmpi ne, %5, %6 : vector<1x256xi32>
    %c0_i32_2 = arith.constant 0 : i32
    %8 = vector.broadcast %c0_i32_2 : i32 to vector<1x256xi32>
    %9 = arith.cmpi slt, %5, %8 : vector<1x256xi32>
    %c0_i32_3 = arith.constant 0 : i32
    %10 = arith.cmpi slt, %3, %c0_i32_3 : i32
    %11 = vector.broadcast %10 : i1 to vector<1x256xi1>
    %12 = vector.broadcast %11 : vector<1x256xi1> to vector<1x256xi1>
    %13 = arith.xori %9, %12 : vector<1x256xi1>
    %14 = arith.andi %13, %7 : vector<1x256xi1>
    %15 = vector.broadcast %3 : i32 to vector<1x256xi32>
    %16 = arith.addi %5, %15 : vector<1x256xi32>
    %17 = arith.select %14, %16, %5 : vector<1x256xi1>, vector<1x256xi32>
    %c16_i32_4 = arith.constant 16 : i32
    %18 = vector.broadcast %c16_i32_4 : i32 to vector<1x256xi32>
    %19 = arith.cmpi sge, %1, %18 : vector<1x256xi32>
    %c240_i32 = arith.constant 240 : i32
    %20 = vector.broadcast %c240_i32 : i32 to vector<1x256xi32>
    %21 = arith.cmpi slt, %1, %20 : vector<1x256xi32>
    %c1_i32_5 = arith.constant 1 : i32
    %22 = vector.broadcast %c1_i32_5 : i32 to vector<1x256xi32>
    %23 = arith.cmpi sge, %17, %22 : vector<1x256xi32>
    %c14_i32 = arith.constant 14 : i32
    %24 = vector.broadcast %c14_i32 : i32 to vector<1x256xi32>
    %25 = arith.cmpi sle, %17, %24 : vector<1x256xi32>
    %c0_6 = arith.constant 0 : index
    %26 = memref.load %arg1[%c0_6] : memref<1xf32, #tpu.memory_space<smem>>
    %27 = vector.broadcast %26 : f32 to vector<8x256xf32>
    %28 = arith.mulf %27, %0 : vector<8x256xf32>
    %c17_i32 = arith.constant 17 : i32
    %29 = tpu.dynamic_rotate %0 by %c17_i32 dim 1 : vector<8x256xf32>, i32 -> vector<8x256xf32>
    %30 = arith.andi %19, %23 : vector<1x256xi1>
    %c0_i32_7 = arith.constant 0 : i32
    %31 = arith.sitofp %c0_i32_7 : i32 to f32
    %32 = vector.shape_cast %30 : vector<1x256xi1> to vector<1x256xi1>
    %33 = vector.broadcast %32 : vector<1x256xi1> to vector<8x256xi1>
    %34 = vector.broadcast %31 : f32 to vector<8x256xf32>
    %35 = arith.select %33, %29, %34 : vector<8x256xi1>, vector<8x256xf32>
    %c0_8 = arith.constant 0 : index
    %c0_9 = arith.constant 0 : index
    %c0_10 = arith.constant 0 : index
    %36 = vector.load %arg2[%c0_8, %c0_9, %c0_10] : memref<9x8x8xf32, #tpu.memory_space<vmem>>, vector<1x8x8xf32>
    %37 = vector.shape_cast %36 : vector<1x8x8xf32> to vector<8x8xf32>
    %cst = arith.constant dense<0.000000e+00> : vector<8x256xf32>
    %38 = tpu.matmul %37, %35, %cst {dimension_numbers = #tpu.dot_dimension_numbers<[1], [0], [0], [1], [0, 0, 1, 1], [], []>} : vector<8x8xf32>, vector<8x256xf32>, vector<8x256xf32> -> vector<8x256xf32>
    %39 = arith.addf %28, %38 : vector<8x256xf32>
    %c16_i32_11 = arith.constant 16 : i32
    %40 = tpu.dynamic_rotate %0 by %c16_i32_11 dim 1 : vector<8x256xf32>, i32 -> vector<8x256xf32>
    %c0_i32_12 = arith.constant 0 : i32
    %41 = arith.sitofp %c0_i32_12 : i32 to f32
    %42 = vector.shape_cast %19 : vector<1x256xi1> to vector<1x256xi1>
    %43 = vector.broadcast %42 : vector<1x256xi1> to vector<8x256xi1>
    %44 = vector.broadcast %41 : f32 to vector<8x256xf32>
    %45 = arith.select %43, %40, %44 : vector<8x256xi1>, vector<8x256xf32>
    %c1 = arith.constant 1 : index
    %c0_13 = arith.constant 0 : index
    %c0_14 = arith.constant 0 : index
    %46 = vector.load %arg2[%c1, %c0_13, %c0_14] : memref<9x8x8xf32, #tpu.memory_space<vmem>>, vector<1x8x8xf32>
    %47 = vector.shape_cast %46 : vector<1x8x8xf32> to vector<8x8xf32>
    %cst_15 = arith.constant dense<0.000000e+00> : vector<8x256xf32>
    %48 = tpu.matmul %47, %45, %cst_15 {dimension_numbers = #tpu.dot_dimension_numbers<[1], [0], [0], [1], [0, 0, 1, 1], [], []>} : vector<8x8xf32>, vector<8x256xf32>, vector<8x256xf32> -> vector<8x256xf32>
    %49 = arith.addf %39, %48 : vector<8x256xf32>
    %c15_i32 = arith.constant 15 : i32
    %50 = tpu.dynamic_rotate %0 by %c15_i32 dim 1 : vector<8x256xf32>, i32 -> vector<8x256xf32>
    %51 = arith.andi %19, %25 : vector<1x256xi1>
    %c0_i32_16 = arith.constant 0 : i32
    %52 = arith.sitofp %c0_i32_16 : i32 to f32
    %53 = vector.shape_cast %51 : vector<1x256xi1> to vector<1x256xi1>
    %54 = vector.broadcast %53 : vector<1x256xi1> to vector<8x256xi1>
    %55 = vector.broadcast %52 : f32 to vector<8x256xf32>
    %56 = arith.select %54, %50, %55 : vector<8x256xi1>, vector<8x256xf32>
    %c2 = arith.constant 2 : index
    %c0_17 = arith.constant 0 : index
    %c0_18 = arith.constant 0 : index
    %57 = vector.load %arg2[%c2, %c0_17, %c0_18] : memref<9x8x8xf32, #tpu.memory_space<vmem>>, vector<1x8x8xf32>
    %58 = vector.shape_cast %57 : vector<1x8x8xf32> to vector<8x8xf32>
    %cst_19 = arith.constant dense<0.000000e+00> : vector<8x256xf32>
    %59 = tpu.matmul %58, %56, %cst_19 {dimension_numbers = #tpu.dot_dimension_numbers<[1], [0], [0], [1], [0, 0, 1, 1], [], []>} : vector<8x8xf32>, vector<8x256xf32>, vector<8x256xf32> -> vector<8x256xf32>
    %60 = arith.addf %49, %59 : vector<8x256xf32>
    %c1_i32_20 = arith.constant 1 : i32
    %61 = tpu.dynamic_rotate %0 by %c1_i32_20 dim 1 : vector<8x256xf32>, i32 -> vector<8x256xf32>
    %c0_i32_21 = arith.constant 0 : i32
    %62 = arith.sitofp %c0_i32_21 : i32 to f32
    %63 = vector.shape_cast %23 : vector<1x256xi1> to vector<1x256xi1>
    %64 = vector.broadcast %63 : vector<1x256xi1> to vector<8x256xi1>
    %65 = vector.broadcast %62 : f32 to vector<8x256xf32>
    %66 = arith.select %64, %61, %65 : vector<8x256xi1>, vector<8x256xf32>
    %c3 = arith.constant 3 : index
    %c0_22 = arith.constant 0 : index
    %c0_23 = arith.constant 0 : index
    %67 = vector.load %arg2[%c3, %c0_22, %c0_23] : memref<9x8x8xf32, #tpu.memory_space<vmem>>, vector<1x8x8xf32>
    %68 = vector.shape_cast %67 : vector<1x8x8xf32> to vector<8x8xf32>
    %cst_24 = arith.constant dense<0.000000e+00> : vector<8x256xf32>
    %69 = tpu.matmul %68, %66, %cst_24 {dimension_numbers = #tpu.dot_dimension_numbers<[1], [0], [0], [1], [0, 0, 1, 1], [], []>} : vector<8x8xf32>, vector<8x256xf32>, vector<8x256xf32> -> vector<8x256xf32>
    %70 = arith.addf %60, %69 : vector<8x256xf32>
    %c4 = arith.constant 4 : index
    %c0_25 = arith.constant 0 : index
    %c0_26 = arith.constant 0 : index
    %71 = vector.load %arg2[%c4, %c0_25, %c0_26] : memref<9x8x8xf32, #tpu.memory_space<vmem>>, vector<1x8x8xf32>
    %72 = vector.shape_cast %71 : vector<1x8x8xf32> to vector<8x8xf32>
    %cst_27 = arith.constant dense<0.000000e+00> : vector<8x256xf32>
    %73 = tpu.matmul %72, %0, %cst_27 {dimension_numbers = #tpu.dot_dimension_numbers<[1], [0], [0], [1], [0, 0, 1, 1], [], []>} : vector<8x8xf32>, vector<8x256xf32>, vector<8x256xf32> -> vector<8x256xf32>
    %74 = arith.addf %70, %73 : vector<8x256xf32>
    %c255_i32 = arith.constant 255 : i32
    %75 = tpu.dynamic_rotate %0 by %c255_i32 dim 1 : vector<8x256xf32>, i32 -> vector<8x256xf32>
    %c0_i32_28 = arith.constant 0 : i32
    %76 = arith.sitofp %c0_i32_28 : i32 to f32
    %77 = vector.shape_cast %25 : vector<1x256xi1> to vector<1x256xi1>
    %78 = vector.broadcast %77 : vector<1x256xi1> to vector<8x256xi1>
    %79 = vector.broadcast %76 : f32 to vector<8x256xf32>
    %80 = arith.select %78, %75, %79 : vector<8x256xi1>, vector<8x256xf32>
    %c5 = arith.constant 5 : index
    %c0_29 = arith.constant 0 : index
    %c0_30 = arith.constant 0 : index
    %81 = vector.load %arg2[%c5, %c0_29, %c0_30] : memref<9x8x8xf32, #tpu.memory_space<vmem>>, vector<1x8x8xf32>
    %82 = vector.shape_cast %81 : vector<1x8x8xf32> to vector<8x8xf32>
    %cst_31 = arith.constant dense<0.000000e+00> : vector<8x256xf32>
    %83 = tpu.matmul %82, %80, %cst_31 {dimension_numbers = #tpu.dot_dimension_numbers<[1], [0], [0], [1], [0, 0, 1, 1], [], []>} : vector<8x8xf32>, vector<8x256xf32>, vector<8x256xf32> -> vector<8x256xf32>
    %84 = arith.addf %74, %83 : vector<8x256xf32>
    %c241_i32 = arith.constant 241 : i32
    %85 = tpu.dynamic_rotate %0 by %c241_i32 dim 1 : vector<8x256xf32>, i32 -> vector<8x256xf32>
    %86 = arith.andi %21, %23 : vector<1x256xi1>
    %c0_i32_32 = arith.constant 0 : i32
    %87 = arith.sitofp %c0_i32_32 : i32 to f32
    %88 = vector.shape_cast %86 : vector<1x256xi1> to vector<1x256xi1>
    %89 = vector.broadcast %88 : vector<1x256xi1> to vector<8x256xi1>
    %90 = vector.broadcast %87 : f32 to vector<8x256xf32>
    %91 = arith.select %89, %85, %90 : vector<8x256xi1>, vector<8x256xf32>
    %c6 = arith.constant 6 : index
    %c0_33 = arith.constant 0 : index
    %c0_34 = arith.constant 0 : index
    %92 = vector.load %arg2[%c6, %c0_33, %c0_34] : memref<9x8x8xf32, #tpu.memory_space<vmem>>, vector<1x8x8xf32>
    %93 = vector.shape_cast %92 : vector<1x8x8xf32> to vector<8x8xf32>
    %cst_35 = arith.constant dense<0.000000e+00> : vector<8x256xf32>
    %94 = tpu.matmul %93, %91, %cst_35 {dimension_numbers = #tpu.dot_dimension_numbers<[1], [0], [0], [1], [0, 0, 1, 1], [], []>} : vector<8x8xf32>, vector<8x256xf32>, vector<8x256xf32> -> vector<8x256xf32>
    %95 = arith.addf %84, %94 : vector<8x256xf32>
    %c240_i32_36 = arith.constant 240 : i32
    %96 = tpu.dynamic_rotate %0 by %c240_i32_36 dim 1 : vector<8x256xf32>, i32 -> vector<8x256xf32>
    %c0_i32_37 = arith.constant 0 : i32
    %97 = arith.sitofp %c0_i32_37 : i32 to f32
    %98 = vector.shape_cast %21 : vector<1x256xi1> to vector<1x256xi1>
    %99 = vector.broadcast %98 : vector<1x256xi1> to vector<8x256xi1>
    %100 = vector.broadcast %97 : f32 to vector<8x256xf32>
    %101 = arith.select %99, %96, %100 : vector<8x256xi1>, vector<8x256xf32>
    %c7 = arith.constant 7 : index
    %c0_38 = arith.constant 0 : index
    %c0_39 = arith.constant 0 : index
    %102 = vector.load %arg2[%c7, %c0_38, %c0_39] : memref<9x8x8xf32, #tpu.memory_space<vmem>>, vector<1x8x8xf32>
    %103 = vector.shape_cast %102 : vector<1x8x8xf32> to vector<8x8xf32>
    %cst_40 = arith.constant dense<0.000000e+00> : vector<8x256xf32>
    %104 = tpu.matmul %103, %101, %cst_40 {dimension_numbers = #tpu.dot_dimension_numbers<[1], [0], [0], [1], [0, 0, 1, 1], [], []>} : vector<8x8xf32>, vector<8x256xf32>, vector<8x256xf32> -> vector<8x256xf32>
    %105 = arith.addf %95, %104 : vector<8x256xf32>
    %c239_i32 = arith.constant 239 : i32
    %106 = tpu.dynamic_rotate %0 by %c239_i32 dim 1 : vector<8x256xf32>, i32 -> vector<8x256xf32>
    %107 = arith.andi %21, %25 : vector<1x256xi1>
    %c0_i32_41 = arith.constant 0 : i32
    %108 = arith.sitofp %c0_i32_41 : i32 to f32
    %109 = vector.shape_cast %107 : vector<1x256xi1> to vector<1x256xi1>
    %110 = vector.broadcast %109 : vector<1x256xi1> to vector<8x256xi1>
    %111 = vector.broadcast %108 : f32 to vector<8x256xf32>
    %112 = arith.select %110, %106, %111 : vector<8x256xi1>, vector<8x256xf32>
    %c8 = arith.constant 8 : index
    %c0_42 = arith.constant 0 : index
    %c0_43 = arith.constant 0 : index
    %113 = vector.load %arg2[%c8, %c0_42, %c0_43] : memref<9x8x8xf32, #tpu.memory_space<vmem>>, vector<1x8x8xf32>
    %114 = vector.shape_cast %113 : vector<1x8x8xf32> to vector<8x8xf32>
    %cst_44 = arith.constant dense<0.000000e+00> : vector<8x256xf32>
    %115 = tpu.matmul %114, %112, %cst_44 {dimension_numbers = #tpu.dot_dimension_numbers<[1], [0], [0], [1], [0, 0, 1, 1], [], []>} : vector<8x8xf32>, vector<8x256xf32>, vector<8x256xf32> -> vector<8x256xf32>
    %116 = arith.addf %105, %115 : vector<8x256xf32>
    %c0_45 = arith.constant 0 : index
    %c0_46 = arith.constant 0 : index
    %117 = vector.load %arg4[%c0_45, %c0_46] : memref<8x256xf32, #tpu.memory_space<vmem>>, vector<8x256xf32>
    tpu.vector_store %arg4[%c0_45, %c0_46], %116 {strides = array<i32>} : memref<8x256xf32, #tpu.memory_space<vmem>>, vector<8x256xf32>,
    return
  }
  func.func @transform_0(%arg0: i32) -> i32 {
    %c0_i32 = arith.constant 0 : i32
    %c0_i32_0 = arith.constant 0 : i32
    return %c0_i32 : i32
  }
  func.func @transform_1(%arg0: i32) -> (i32, i32, i32) {
    %c0_i32 = arith.constant 0 : i32
    %c0_i32_0 = arith.constant 0 : i32
    %c0_i32_1 = arith.constant 0 : i32
    %c0_i32_2 = arith.constant 0 : i32
    return %c0_i32, %c0_i32_0, %c0_i32_1 : i32, i32, i32
  }
  func.func @transform_2(%arg0: i32) -> (i32, i32) {
    %c0_i32 = arith.constant 0 : i32
    %c0_i32_0 = arith.constant 0 : i32
    return %arg0, %c0_i32 : i32, i32
  }
  func.func @transform_3(%arg0: i32) -> (i32, i32) {
    %c0_i32 = arith.constant 0 : i32
    %c0_i32_0 = arith.constant 0 : i32
    return %arg0, %c0_i32 : i32, i32
  }
}

</mosaic_0001>

<llo_original>
// kernel: darts_layer_choice.1
$region0: #{darts_layer_choice.1}
  #allocation0 [shape = 'u32[]', space=smem, size = 0x4, offset = 0x4, fixed_abs, tag = 'smem constant byte address 0x4 - core index']
  #allocation1 [shape = 'u32[72,128]{1,0:T(1,128)}', space=vmem, size = 0x9000, scoped, tag = 'internal scratch']
  #allocation2 [shape = 'f32[1]{0:T(128)S(6)}', space=smem, size = 0x200, scoped, tag = 'scoped memory for darts_layer_choice.1']
  %s0 = inlined_call_operand.<no memory space> [shape: f32[1], index: 0, kind: input, shape index: {}]
  %s1 = inlined_call_operand.vmem [shape: f32[9,8,8], index: 1, kind: input, shape index: {}]
  %s2 = inlined_call_operand.vmem [shape: f32[8,256], index: 2, kind: input, shape index: {}]
  %s3 = inlined_call_operand.vmem [shape: f32[8,256], index: 3, kind: output, shape index: {}]
  %s4 = sld [smem:[#allocation0]]
  $region22: #{darts_layer_choice.1} parent=0
    _
  %s6 = ssub.s32 1, %s4
  %s7 = scalar_select 0, %s6, %s4
  %8 = sst [smem:[#allocation2]] %s0
  // Predicated region
  $region2: #{darts_layer_choice.1} parent=0 // pred_check
    _
  $region3: #{darts_layer_choice.1} parent=0 // pred_check_branch
    %10 = sbr.rel (0) target = $region5
  $region4: #{darts_layer_choice.1} parent=0 // pred_region
    _
  $region5: #{darts_layer_choice.1} parent=0 // pred_fallthru
    _
  // Predicated region
  $region6: #{darts_layer_choice.1} parent=0 // pred_check
    _
  $region7: #{darts_layer_choice.1} parent=0 // pred_check_branch
    %12 = sbr.rel (0) target = $region9
  $region8: #{darts_layer_choice.1} parent=0 // pred_region
    _
  $region9: #{darts_layer_choice.1} parent=0 // pred_fallthru
    _
  // Predicated region
  $region10: #{darts_layer_choice.1} parent=0 // pred_check
    _
  $region11: #{darts_layer_choice.1} parent=0 // pred_check_branch
    %14 = sbr.rel (0) target = $region13
  $region12: #{darts_layer_choice.1} parent=0 // pred_region
    _
  $region13: #{darts_layer_choice.1} parent=0 // pred_fallthru
    _
  %v15 = vld [vmem:[%s2] sm:$0xff]
  %v16 = vld [vmem:[%s2 + $0x8] sm:$0xff]
  %v17 = vlaneseq
  %v18 = vand.u32 %v17, 127
  %v19 = vadd.s32 %v18, 128
  %vm20 = vcmp.lt.s32.totalorder %v18, 0
  %v21 = vsub.s32 0, %v18
  %v22 = vsel %vm20, %v21, %v18
  %v23 = vshrl.u32 %v22, 4
  %v24 = vand.u32 %v22, 15
  %v25 = vsub.s32 0, %v24
  %v26 = vsel %vm20, %v25, %v24
  %vm27 = vcmp.lt.s32.totalorder %v19, 0
  %v28 = vsub.s32 0, %v19
  %v29 = vsel %vm27, %v28, %v19
  %v30 = vshrl.u32 %v29, 4
  %v31 = vand.u32 %v29, 15
  %v32 = vsub.s32 0, %v31
  %v33 = vsel %vm27, %v32, %v31
  %vm34 = vcmp.ne.s32.totalorder %v26, 0
  %vm35 = vcmp.ne.s32.totalorder %v33, 0
  %vm36 = vcmp.lt.s32.totalorder %v26, 0
  %vm37 = vcmp.lt.s32.totalorder %v33, 0
  %vm38 = vmand %vm36, %vm34
  %vm39 = vmand %vm37, %vm35
  %v40 = vadd.s32 %v26, 16
  %v41 = vadd.s32 %v33, 16
  %v42 = vsel %vm38, %v40, %v26
  %v43 = vsel %vm39, %v41, %v33
  %vm44 = vcmp.ge.s32.totalorder %v18, 16
  %vm45 = vcmp.ge.s32.totalorder %v19, 16
  %vm46 = vcmp.lt.s32.totalorder %v18, 240
  %vm47 = vcmp.lt.s32.totalorder %v19, 240
  %vm48 = vcmp.ge.s32.totalorder %v42, 1
  %vm49 = vcmp.ge.s32.totalorder %v43, 1
  %vm50 = vcmp.le.s32.totalorder %v42, 14
  %vm51 = vcmp.le.s32.totalorder %v43, 14
  %s52 = sld [smem:[#allocation2]]
  %v53 = vstv %s52
  %v54 = vmul.f32 %v53, %v15
  %v55 = vmul.f32 %v53, %v16
  %56 = vrot.lane.b32.xlu0 %v15, 17
  %v57 = vpop.permute.xlu0 %56
  %58 = vrot.lane.b32.xlu0 %v16, 17
  %v59 = vpop.permute.xlu0 %58
  %vm60 = vcmp.lt.s32.totalorder %v18, 17
  %v61 = vsel %vm60, %v57, %v59
  %v62 = vsel %vm60, %v59, %v57
  %vm63 = vmand %vm44, %vm48
  %vm64 = vmand %vm45, %vm49
  %v65 = vsel %vm63, 1, 0
  %v66 = vsel %vm64, 1, 0
  %vm67 = vcmp.eq.s32.totalorder %v65, 1
  %vm68 = vcmp.eq.s32.totalorder %v66, 1
  %v69 = vsel %vm67, %v62, 0.0
  %v70 = vsel %vm68, %v61, 0.0
  %v71 = vld [vmem:[%s1] sm:$0xff]
  %vm72 = vcmask 64512
  %v74 = vsel %vm72, %v71, 0
  %76 = vmatpush.msra.mxu0 0.0
  %77 = vmatpush.msra.mxu0 0.0
  %78 = vmatpush.msra.mxu0 0.0
  %79 = vmatpush.msra.mxu0 0.0
  %80 = vmatpush.msra.mxu0 0.0
  %81 = vmatpush.msra.mxu0 0.0
  %82 = vmatpush.msra.mxu0 0.0
  %83 = vmatpush.msra.mxu0 0.0
  %84 = vmatpush.msra.mxu0 0.0
  %85 = vmatpush.msra.mxu0 0.0
  %86 = vmatpush.msra.mxu0 0.0
  %87 = vmatpush.msra.mxu0 0.0
  %88 = vmatpush.msra.mxu0 0.0
  %89 = vmatpush.msra.mxu0 0.0
  %90 = vmatpush.msra.mxu0 0.0
  %91 = vmatpush.msra.mxu0 %v69
  %92 = vmatmul.f32.gmra.mxu0 %v74
  %v93 = vpop.f32.mrf.mxu0
  %v94 = vadd.f32 0.0, %v93
  %95 = vdwg.mxu0
  %96 = vmatpush.msra.mxu0 0.0
  %97 = vmatpush.msra.mxu0 0.0
  %98 = vmatpush.msra.mxu0 0.0
  %99 = vmatpush.msra.mxu0 0.0
  %100 = vmatpush.msra.mxu0 0.0
  %101 = vmatpush.msra.mxu0 0.0
  %102 = vmatpush.msra.mxu0 0.0
  %103 = vmatpush.msra.mxu0 0.0
  %104 = vmatpush.msra.mxu0 0.0
  %105 = vmatpush.msra.mxu0 0.0
  %106 = vmatpush.msra.mxu0 0.0
  %107 = vmatpush.msra.mxu0 0.0
  %108 = vmatpush.msra.mxu0 0.0
  %109 = vmatpush.msra.mxu0 0.0
  %110 = vmatpush.msra.mxu0 0.0
  %111 = vmatpush.msra.mxu0 %v70
  %112 = vmatmul.f32.gmra.mxu0 %v74
  %v113 = vpop.f32.mrf.mxu0
  %v114 = vadd.f32 0.0, %v113
  %115 = vdwg.mxu0
  %v116 = vadd.f32 %v54, %v94
  %v117 = vadd.f32 %v55, %v114
  %118 = vrot.lane.b32.xlu0 %v15, 16
  %v119 = vpop.permute.xlu0 %118
  %120 = vrot.lane.b32.xlu0 %v16, 16
  %v121 = vpop.permute.xlu0 %120
  %vm122 = vcmp.lt.s32.totalorder %v18, 16
  %v123 = vsel %vm122, %v119, %v121
  %v124 = vsel %vm122, %v121, %v119
  %v125 = vsel %vm44, 1, 0
  %v126 = vsel %vm45, 1, 0
  %vm127 = vcmp.eq.s32.totalorder %v125, 1
  %vm128 = vcmp.eq.s32.totalorder %v126, 1
  %v129 = vsel %vm127, %v124, 0.0
  %v130 = vsel %vm128, %v123, 0.0
  %s131 = scalar_lea.vmem %s1, 8
  %v132 = vld [vmem:[%s131] sm:$0xff]
  %v134 = vsel %vm72, %v132, 0
  %136 = vmatpush.msra.mxu0 0.0
  %137 = vmatpush.msra.mxu0 0.0
  %138 = vmatpush.msra.mxu0 0.0
  %139 = vmatpush.msra.mxu0 0.0
  %140 = vmatpush.msra.mxu0 0.0
  %141 = vmatpush.msra.mxu0 0.0
  %142 = vmatpush.msra.mxu0 0.0
  %143 = vmatpush.msra.mxu0 0.0
  %144 = vmatpush.msra.mxu0 0.0
  %145 = vmatpush.msra.mxu0 0.0
  %146 = vmatpush.msra.mxu0 0.0
  %147 = vmatpush.msra.mxu0 0.0
  %148 = vmatpush.msra.mxu0 0.0
  %149 = vmatpush.msra.mxu0 0.0
  %150 = vmatpush.msra.mxu0 0.0
  %151 = vmatpush.msra.mxu0 %v129
  %152 = vmatmul.f32.gmra.mxu0 %v134
  %v153 = vpop.f32.mrf.mxu0
  %v154 = vadd.f32 0.0, %v153
  %155 = vdwg.mxu0
  %156 = vmatpush.msra.mxu0 0.0
  %157 = vmatpush.msra.mxu0 0.0
  %158 = vmatpush.msra.mxu0 0.0
  %159 = vmatpush.msra.mxu0 0.0
  %160 = vmatpush.msra.mxu0 0.0
  %161 = vmatpush.msra.mxu0 0.0
  %162 = vmatpush.msra.mxu0 0.0
  %163 = vmatpush.msra.mxu0 0.0
  %164 = vmatpush.msra.mxu0 0.0
  %165 = vmatpush.msra.mxu0 0.0
  %166 = vmatpush.msra.mxu0 0.0
  %167 = vmatpush.msra.mxu0 0.0
  %168 = vmatpush.msra.mxu0 0.0
  %169 = vmatpush.msra.mxu0 0.0
  %170 = vmatpush.msra.mxu0 0.0
  %171 = vmatpush.msra.mxu0 %v130
  %172 = vmatmul.f32.gmra.mxu0 %v134
  %v173 = vpop.f32.mrf.mxu0
  %v174 = vadd.f32 0.0, %v173
  %175 = vdwg.mxu0
  %v176 = vadd.f32 %v116, %v154
  %v177 = vadd.f32 %v117, %v174
  %178 = vrot.lane.b32.xlu0 %v15, 15
  %v179 = vpop.permute.xlu0 %178
  %180 = vrot.lane.b32.xlu0 %v16, 15
  %v181 = vpop.permute.xlu0 %180
  %vm182 = vcmp.lt.s32.totalorder %v18, 15
  %v183 = vsel %vm182, %v179, %v181
  %v184 = vsel %vm182, %v181, %v179
  %vm185 = vmand %vm44, %vm50
  %vm186 = vmand %vm45, %vm51
  %v187 = vsel %vm185, 1, 0
  %v188 = vsel %vm186, 1, 0
  %vm189 = vcmp.eq.s32.totalorder %v187, 1
  %vm190 = vcmp.eq.s32.totalorder %v188, 1
  %v191 = vsel %vm189, %v184, 0.0
  %v192 = vsel %vm190, %v183, 0.0
  %s193 = scalar_lea.vmem %s1, 16
  %v194 = vld [vmem:[%s193] sm:$0xff]
  %v196 = vsel %vm72, %v194, 0
  %198 = vmatpush.msra.mxu0 0.0
  %199 = vmatpush.msra.mxu0 0.0
  %200 = vmatpush.msra.mxu0 0.0
  %201 = vmatpush.msra.mxu0 0.0
  %202 = vmatpush.msra.mxu0 0.0
  %203 = vmatpush.msra.mxu0 0.0
  %204 = vmatpush.msra.mxu0 0.0
  %205 = vmatpush.msra.mxu0 0.0
  %206 = vmatpush.msra.mxu0 0.0
  %207 = vmatpush.msra.mxu0 0.0
  %208 = vmatpush.msra.mxu0 0.0
  %209 = vmatpush.msra.mxu0 0.0
  %210 = vmatpush.msra.mxu0 0.0
  %211 = vmatpush.msra.mxu0 0.0
  %212 = vmatpush.msra.mxu0 0.0
  %213 = vmatpush.msra.mxu0 %v191
  %214 = vmatmul.f32.gmra.mxu0 %v196
  %v215 = vpop.f32.mrf.mxu0
  %v216 = vadd.f32 0.0, %v215
  %217 = vdwg.mxu0
  %218 = vmatpush.msra.mxu0 0.0
  %219 = vmatpush.msra.mxu0 0.0
  %220 = vmatpush.msra.mxu0 0.0
  %221 = vmatpush.msra.mxu0 0.0
  %222 = vmatpush.msra.mxu0 0.0
  %223 = vmatpush.msra.mxu0 0.0
  %224 = vmatpush.msra.mxu0 0.0
  %225 = vmatpush.msra.mxu0 0.0
  %226 = vmatpush.msra.mxu0 0.0
  %227 = vmatpush.msra.mxu0 0.0
  %228 = vmatpush.msra.mxu0 0.0
  %229 = vmatpush.msra.mxu0 0.0
  %230 = vmatpush.msra.mxu0 0.0
  %231 = vmatpush.msra.mxu0 0.0
  %232 = vmatpush.msra.mxu0 0.0
  %233 = vmatpush.msra.mxu0 %v192
  %234 = vmatmul.f32.gmra.mxu0 %v196
  %v235 = vpop.f32.mrf.mxu0
  %v236 = vadd.f32 0.0, %v235
  %237 = vdwg.mxu0
  %v238 = vadd.f32 %v176, %v216
  %v239 = vadd.f32 %v177, %v236
  %240 = vrot.lane.b32.xlu0 %v15, 1
  %v241 = vpop.permute.xlu0 %240
  %242 = vrot.lane.b32.xlu0 %v16, 1
  %v243 = vpop.permute.xlu0 %242
  %vm244 = vcmp.lt.s32.totalorder %v18, 1
  %v245 = vsel %vm244, %v241, %v243
  %v246 = vsel %vm244, %v243, %v241
  %v247 = vsel %vm48, 1, 0
  %v248 = vsel %vm49, 1, 0
  %vm249 = vcmp.eq.s32.totalorder %v247, 1
  %vm250 = vcmp.eq.s32.totalorder %v248, 1
  %v251 = vsel %vm249, %v246, 0.0
  %v252 = vsel %vm250, %v245, 0.0
  %s253 = scalar_lea.vmem %s1, 24
  %v254 = vld [vmem:[%s253] sm:$0xff]
  %v256 = vsel %vm72, %v254, 0
  %258 = vmatpush.msra.mxu0 0.0
  %259 = vmatpush.msra.mxu0 0.0
  %260 = vmatpush.msra.mxu0 0.0
  %261 = vmatpush.msra.mxu0 0.0
  %262 = vmatpush.msra.mxu0 0.0
  %263 = vmatpush.msra.mxu0 0.0
  %264 = vmatpush.msra.mxu0 0.0
  %265 = vmatpush.msra.mxu0 0.0
  %266 = vmatpush.msra.mxu0 0.0
  %267 = vmatpush.msra.mxu0 0.0
  %268 = vmatpush.msra.mxu0 0.0
  %269 = vmatpush.msra.mxu0 0.0
  %270 = vmatpush.msra.mxu0 0.0
  %271 = vmatpush.msra.mxu0 0.0
  %272 = vmatpush.msra.mxu0 0.0
  %273 = vmatpush.msra.mxu0 %v251
  %274 = vmatmul.f32.gmra.mxu0 %v256
  %v275 = vpop.f32.mrf.mxu0
  %v276 = vadd.f32 0.0, %v275
  %277 = vdwg.mxu0
  %278 = vmatpush.msra.mxu0 0.0
  %279 = vmatpush.msra.mxu0 0.0
  %280 = vmatpush.msra.mxu0 0.0
  %281 = vmatpush.msra.mxu0 0.0
  %282 = vmatpush.msra.mxu0 0.0
  %283 = vmatpush.msra.mxu0 0.0
  %284 = vmatpush.msra.mxu0 0.0
  %285 = vmatpush.msra.mxu0 0.0
  %286 = vmatpush.msra.mxu0 0.0
  %287 = vmatpush.msra.mxu0 0.0
  %288 = vmatpush.msra.mxu0 0.0
  %289 = vmatpush.msra.mxu0 0.0
  %290 = vmatpush.msra.mxu0 0.0
  %291 = vmatpush.msra.mxu0 0.0
  %292 = vmatpush.msra.mxu0 0.0
  %293 = vmatpush.msra.mxu0 %v252
  %294 = vmatmul.f32.gmra.mxu0 %v256
  %v295 = vpop.f32.mrf.mxu0
  %v296 = vadd.f32 0.0, %v295
  %297 = vdwg.mxu0
  %v298 = vadd.f32 %v238, %v276
  %v299 = vadd.f32 %v239, %v296
  %s300 = scalar_lea.vmem %s1, 32
  %v301 = vld [vmem:[%s300] sm:$0xff]
  %v303 = vsel %vm72, %v301, 0
  %305 = vmatpush.msra.mxu0 0.0
  %306 = vmatpush.msra.mxu0 0.0
  %307 = vmatpush.msra.mxu0 0.0
  %308 = vmatpush.msra.mxu0 0.0
  %309 = vmatpush.msra.mxu0 0.0
  %310 = vmatpush.msra.mxu0 0.0
  %311 = vmatpush.msra.mxu0 0.0
  %312 = vmatpush.msra.mxu0 0.0
  %313 = vmatpush.msra.mxu0 0.0
  %314 = vmatpush.msra.mxu0 0.0
  %315 = vmatpush.msra.mxu0 0.0
  %316 = vmatpush.msra.mxu0 0.0
  %317 = vmatpush.msra.mxu0 0.0
  %318 = vmatpush.msra.mxu0 0.0
  %319 = vmatpush.msra.mxu0 0.0
  %320 = vmatpush.msra.mxu0 %v15
  %321 = vmatmul.f32.gmra.mxu0 %v303
  %v322 = vpop.f32.mrf.mxu0
  %v323 = vadd.f32 0.0, %v322
  %324 = vdwg.mxu0
  %325 = vmatpush.msra.mxu0 0.0
  %326 = vmatpush.msra.mxu0 0.0
  %327 = vmatpush.msra.mxu0 0.0
  %328 = vmatpush.msra.mxu0 0.0
  %329 = vmatpush.msra.mxu0 0.0
  %330 = vmatpush.msra.mxu0 0.0
  %331 = vmatpush.msra.mxu0 0.0
  %332 = vmatpush.msra.mxu0 0.0
  %333 = vmatpush.msra.mxu0 0.0
  %334 = vmatpush.msra.mxu0 0.0
  %335 = vmatpush.msra.mxu0 0.0
  %336 = vmatpush.msra.mxu0 0.0
  %337 = vmatpush.msra.mxu0 0.0
  %338 = vmatpush.msra.mxu0 0.0
  %339 = vmatpush.msra.mxu0 0.0
  %340 = vmatpush.msra.mxu0 %v16
  %341 = vmatmul.f32.gmra.mxu0 %v303
  %v342 = vpop.f32.mrf.mxu0
  %v343 = vadd.f32 0.0, %v342
  %344 = vdwg.mxu0
  %v345 = vadd.f32 %v298, %v323
  %v346 = vadd.f32 %v299, %v343
  %347 = vrot.lane.b32.xlu0 %v15, 127
  %v348 = vpop.permute.xlu0 %347
  %349 = vrot.lane.b32.xlu0 %v16, 127
  %v350 = vpop.permute.xlu0 %349
  %vm351 = vcmp.lt.s32.totalorder %v18, 127
  %v352 = vsel %vm351, %v348, %v350
  %v353 = vsel %vm351, %v350, %v348
  %v354 = vsel %vm50, 1, 0
  %v355 = vsel %vm51, 1, 0
  %vm356 = vcmp.eq.s32.totalorder %v354, 1
  %vm357 = vcmp.eq.s32.totalorder %v355, 1
  %v358 = vsel %vm356, %v352, 0.0
  %v359 = vsel %vm357, %v353, 0.0
  %s360 = scalar_lea.vmem %s1, 40
  %v361 = vld [vmem:[%s360] sm:$0xff]
  %v363 = vsel %vm72, %v361, 0
  %365 = vmatpush.msra.mxu0 0.0
  %366 = vmatpush.msra.mxu0 0.0
  %367 = vmatpush.msra.mxu0 0.0
  %368 = vmatpush.msra.mxu0 0.0
  %369 = vmatpush.msra.mxu0 0.0
  %370 = vmatpush.msra.mxu0 0.0
  %371 = vmatpush.msra.mxu0 0.0
  %372 = vmatpush.msra.mxu0 0.0
  %373 = vmatpush.msra.mxu0 0.0
  %374 = vmatpush.msra.mxu0 0.0
  %375 = vmatpush.msra.mxu0 0.0
  %376 = vmatpush.msra.mxu0 0.0
  %377 = vmatpush.msra.mxu0 0.0
  %378 = vmatpush.msra.mxu0 0.0
  %379 = vmatpush.msra.mxu0 0.0
  %380 = vmatpush.msra.mxu0 %v358
  %381 = vmatmul.f32.gmra.mxu0 %v363
  %v382 = vpop.f32.mrf.mxu0
  %v383 = vadd.f32 0.0, %v382
  %384 = vdwg.mxu0
  %385 = vmatpush.msra.mxu0 0.0
  %386 = vmatpush.msra.mxu0 0.0
  %387 = vmatpush.msra.mxu0 0.0
  %388 = vmatpush.msra.mxu0 0.0
  %389 = vmatpush.msra.mxu0 0.0
  %390 = vmatpush.msra.mxu0 0.0
  %391 = vmatpush.msra.mxu0 0.0
  %392 = vmatpush.msra.mxu0 0.0
  %393 = vmatpush.msra.mxu0 0.0
  %394 = vmatpush.msra.mxu0 0.0
  %395 = vmatpush.msra.mxu0 0.0
  %396 = vmatpush.msra.mxu0 0.0
  %397 = vmatpush.msra.mxu0 0.0
  %398 = vmatpush.msra.mxu0 0.0
  %399 = vmatpush.msra.mxu0 0.0
  %400 = vmatpush.msra.mxu0 %v359
  %401 = vmatmul.f32.gmra.mxu0 %v363
  %v402 = vpop.f32.mrf.mxu0
  %v403 = vadd.f32 0.0, %v402
  %404 = vdwg.mxu0
  %v405 = vadd.f32 %v345, %v383
  %v406 = vadd.f32 %v346, %v403
  %407 = vrot.lane.b32.xlu0 %v15, 113
  %v408 = vpop.permute.xlu0 %407
  %409 = vrot.lane.b32.xlu0 %v16, 113
  %v410 = vpop.permute.xlu0 %409
  %vm411 = vcmp.lt.s32.totalorder %v18, 113
  %v412 = vsel %vm411, %v408, %v410
  %v413 = vsel %vm411, %v410, %v408
  %vm414 = vmand %vm46, %vm48
  %vm415 = vmand %vm47, %vm49
  %v416 = vsel %vm414, 1, 0
  %v417 = vsel %vm415, 1, 0
  %vm418 = vcmp.eq.s32.totalorder %v416, 1
  %vm419 = vcmp.eq.s32.totalorder %v417, 1
  %v420 = vsel %vm418, %v412, 0.0
  %v421 = vsel %vm419, %v413, 0.0
  %s422 = scalar_lea.vmem %s1, 48
  %v423 = vld [vmem:[%s422] sm:$0xff]
  %v425 = vsel %vm72, %v423, 0
  %427 = vmatpush.msra.mxu0 0.0
  %428 = vmatpush.msra.mxu0 0.0
  %429 = vmatpush.msra.mxu0 0.0
  %430 = vmatpush.msra.mxu0 0.0
  %431 = vmatpush.msra.mxu0 0.0
  %432 = vmatpush.msra.mxu0 0.0
  %433 = vmatpush.msra.mxu0 0.0
  %434 = vmatpush.msra.mxu0 0.0
  %435 = vmatpush.msra.mxu0 0.0
  %436 = vmatpush.msra.mxu0 0.0
  %437 = vmatpush.msra.mxu0 0.0
  %438 = vmatpush.msra.mxu0 0.0
  %439 = vmatpush.msra.mxu0 0.0
  %440 = vmatpush.msra.mxu0 0.0
  %441 = vmatpush.msra.mxu0 0.0
  %442 = vmatpush.msra.mxu0 %v420
  %443 = vmatmul.f32.gmra.mxu0 %v425
  %v444 = vpop.f32.mrf.mxu0
  %v445 = vadd.f32 0.0, %v444
  %446 = vdwg.mxu0
  %447 = vmatpush.msra.mxu0 0.0
  %448 = vmatpush.msra.mxu0 0.0
  %449 = vmatpush.msra.mxu0 0.0
  %450 = vmatpush.msra.mxu0 0.0
  %451 = vmatpush.msra.mxu0 0.0
  %452 = vmatpush.msra.mxu0 0.0
  %453 = vmatpush.msra.mxu0 0.0
  %454 = vmatpush.msra.mxu0 0.0
  %455 = vmatpush.msra.mxu0 0.0
  %456 = vmatpush.msra.mxu0 0.0
  %457 = vmatpush.msra.mxu0 0.0
  %458 = vmatpush.msra.mxu0 0.0
  %459 = vmatpush.msra.mxu0 0.0
  %460 = vmatpush.msra.mxu0 0.0
  %461 = vmatpush.msra.mxu0 0.0
  %462 = vmatpush.msra.mxu0 %v421
  %463 = vmatmul.f32.gmra.mxu0 %v425
  %v464 = vpop.f32.mrf.mxu0
  %v465 = vadd.f32 0.0, %v464
  %466 = vdwg.mxu0
  %v467 = vadd.f32 %v405, %v445
  %v468 = vadd.f32 %v406, %v465
  %469 = vrot.lane.b32.xlu0 %v15, 112
  %v470 = vpop.permute.xlu0 %469
  %471 = vrot.lane.b32.xlu0 %v16, 112
  %v472 = vpop.permute.xlu0 %471
  %vm473 = vcmp.lt.s32.totalorder %v18, 112
  %v474 = vsel %vm473, %v470, %v472
  %v475 = vsel %vm473, %v472, %v470
  %v476 = vsel %vm46, 1, 0
  %v477 = vsel %vm47, 1, 0
  %vm478 = vcmp.eq.s32.totalorder %v476, 1
  %vm479 = vcmp.eq.s32.totalorder %v477, 1
  %v480 = vsel %vm478, %v474, 0.0
  %v481 = vsel %vm479, %v475, 0.0
  %s482 = scalar_lea.vmem %s1, 56
  %v483 = vld [vmem:[%s482] sm:$0xff]
  %v485 = vsel %vm72, %v483, 0
  %487 = vmatpush.msra.mxu0 0.0
  %488 = vmatpush.msra.mxu0 0.0
  %489 = vmatpush.msra.mxu0 0.0
  %490 = vmatpush.msra.mxu0 0.0
  %491 = vmatpush.msra.mxu0 0.0
  %492 = vmatpush.msra.mxu0 0.0
  %493 = vmatpush.msra.mxu0 0.0
  %494 = vmatpush.msra.mxu0 0.0
  %495 = vmatpush.msra.mxu0 0.0
  %496 = vmatpush.msra.mxu0 0.0
  %497 = vmatpush.msra.mxu0 0.0
  %498 = vmatpush.msra.mxu0 0.0
  %499 = vmatpush.msra.mxu0 0.0
  %500 = vmatpush.msra.mxu0 0.0
  %501 = vmatpush.msra.mxu0 0.0
  %502 = vmatpush.msra.mxu0 %v480
  %503 = vmatmul.f32.gmra.mxu0 %v485
  %v504 = vpop.f32.mrf.mxu0
  %v505 = vadd.f32 0.0, %v504
  %506 = vdwg.mxu0
  %507 = vmatpush.msra.mxu0 0.0
  %508 = vmatpush.msra.mxu0 0.0
  %509 = vmatpush.msra.mxu0 0.0
  %510 = vmatpush.msra.mxu0 0.0
  %511 = vmatpush.msra.mxu0 0.0
  %512 = vmatpush.msra.mxu0 0.0
  %513 = vmatpush.msra.mxu0 0.0
  %514 = vmatpush.msra.mxu0 0.0
  %515 = vmatpush.msra.mxu0 0.0
  %516 = vmatpush.msra.mxu0 0.0
  %517 = vmatpush.msra.mxu0 0.0
  %518 = vmatpush.msra.mxu0 0.0
  %519 = vmatpush.msra.mxu0 0.0
  %520 = vmatpush.msra.mxu0 0.0
  %521 = vmatpush.msra.mxu0 0.0
  %522 = vmatpush.msra.mxu0 %v481
  %523 = vmatmul.f32.gmra.mxu0 %v485
  %v524 = vpop.f32.mrf.mxu0
  %v525 = vadd.f32 0.0, %v524
  %526 = vdwg.mxu0
  %v527 = vadd.f32 %v467, %v505
  %v528 = vadd.f32 %v468, %v525
  %529 = vrot.lane.b32.xlu0 %v15, 111
  %v530 = vpop.permute.xlu0 %529
  %531 = vrot.lane.b32.xlu0 %v16, 111
  %v532 = vpop.permute.xlu0 %531
  %vm533 = vcmp.lt.s32.totalorder %v18, 111
  %v534 = vsel %vm533, %v530, %v532
  %v535 = vsel %vm533, %v532, %v530
  %vm536 = vmand %vm46, %vm50
  %vm537 = vmand %vm47, %vm51
  %v538 = vsel %vm536, 1, 0
  %v539 = vsel %vm537, 1, 0
  %vm540 = vcmp.eq.s32.totalorder %v538, 1
  %vm541 = vcmp.eq.s32.totalorder %v539, 1
  %v542 = vsel %vm540, %v534, 0.0
  %v543 = vsel %vm541, %v535, 0.0
  %s544 = scalar_lea.vmem %s1, 64
  %v545 = vld [vmem:[%s544] sm:$0xff]
  %v547 = vsel %vm72, %v545, 0
  %549 = vmatpush.msra.mxu0 0.0
  %550 = vmatpush.msra.mxu0 0.0
  %551 = vmatpush.msra.mxu0 0.0
  %552 = vmatpush.msra.mxu0 0.0
  %553 = vmatpush.msra.mxu0 0.0
  %554 = vmatpush.msra.mxu0 0.0
  %555 = vmatpush.msra.mxu0 0.0
  %556 = vmatpush.msra.mxu0 0.0
  %557 = vmatpush.msra.mxu0 0.0
  %558 = vmatpush.msra.mxu0 0.0
  %559 = vmatpush.msra.mxu0 0.0
  %560 = vmatpush.msra.mxu0 0.0
  %561 = vmatpush.msra.mxu0 0.0
  %562 = vmatpush.msra.mxu0 0.0
  %563 = vmatpush.msra.mxu0 0.0
  %564 = vmatpush.msra.mxu0 %v542
  %565 = vmatmul.f32.gmra.mxu0 %v547
  %v566 = vpop.f32.mrf.mxu0
  %v567 = vadd.f32 0.0, %v566
  %568 = vdwg.mxu0
  %569 = vmatpush.msra.mxu0 0.0
  %570 = vmatpush.msra.mxu0 0.0
  %571 = vmatpush.msra.mxu0 0.0
  %572 = vmatpush.msra.mxu0 0.0
  %573 = vmatpush.msra.mxu0 0.0
  %574 = vmatpush.msra.mxu0 0.0
  %575 = vmatpush.msra.mxu0 0.0
  %576 = vmatpush.msra.mxu0 0.0
  %577 = vmatpush.msra.mxu0 0.0
  %578 = vmatpush.msra.mxu0 0.0
  %579 = vmatpush.msra.mxu0 0.0
  %580 = vmatpush.msra.mxu0 0.0
  %581 = vmatpush.msra.mxu0 0.0
  %582 = vmatpush.msra.mxu0 0.0
  %583 = vmatpush.msra.mxu0 0.0
  %584 = vmatpush.msra.mxu0 %v543
  %585 = vmatmul.f32.gmra.mxu0 %v547
  %v586 = vpop.f32.mrf.mxu0
  %v587 = vadd.f32 0.0, %v586
  %588 = vdwg.mxu0
  %v589 = vadd.f32 %v527, %v567
  %v590 = vadd.f32 %v528, %v587
  %591 = vst [vmem:[%s3] sm:$0xff] %v589
  %592 = vst [vmem:[%s3 + $0x8] sm:$0xff] %v590
  // Predicated region
  $region14: #{darts_layer_choice.1} parent=0 // pred_check
    _
  $region15: #{darts_layer_choice.1} parent=0 // pred_check_branch
    %594 = sbr.rel (0) target = $region17
  $region16: #{darts_layer_choice.1} parent=0 // pred_region
    _
  $region17: #{darts_layer_choice.1} parent=0 // pred_fallthru
    _
  // Predicated region
  $region18: #{darts_layer_choice.1} parent=0 // pred_check
    _
  $region19: #{darts_layer_choice.1} parent=0 // pred_check_branch
    %596 = sbr.rel (0) target = $region21
  $region20: #{darts_layer_choice.1} parent=0 // pred_region
    _
  $region21: #{darts_layer_choice.1} parent=0 // pred_fallthru
    _

</llo_original>
